<compile_context>
chip_gen: v5e
topology: v5e:2x2
jax: 0.10.0
libtpu: 0.0.40
codegen_flags: <defaults>
</compile_context>

<pallas_src>
import functools

import jax
import jax.numpy as jnp
from jax.experimental import pallas as pl
from jax.experimental.pallas import tpu as pltpu


# ----------------------------------------------------------------------------- kernels
def expert_ffn_kernel_resident(x_ref, w1_ref, b1_ref, w2_ref, b2_ref, o_ref):
    """Weights fully resident (nf == 1): no F reduction, no scratch accumulator."""
    bg, _, tc, m = x_ref.shape
    x = x_ref[...].reshape(bg * tc, m)                               # (rows, M)
    h = jnp.dot(x, w1_ref[0], preferred_element_type=jnp.float32) + b1_ref[0]
    # Cast back to the activation dtype so the second matmul stays on the fast
    # (bf16) MXU path when inputs are bf16; no-op for f32.
    h = jnp.maximum(h, 0.0).astype(x.dtype)                          # ReLU, (rows, F)
    out = jnp.dot(h, w2_ref[0], preferred_element_type=jnp.float32) + b2_ref[0]
    o_ref[...] = out.reshape(bg, 1, tc, m).astype(o_ref.dtype)


def expert_ffn_kernel_tiled(x_ref, w1_ref, b1_ref, w2_ref, b2_ref, o_ref, acc_ref):
    """F tiled (nf > 1): accumulate partial second-matmul products in f32 scratch."""
    f = pl.program_id(3)
    bg, _, tc, m = x_ref.shape

    @pl.when(f == 0)
    def _():
        acc_ref[...] = jnp.zeros_like(acc_ref)

    x = x_ref[...].reshape(bg * tc, m)                               # (rows, M)
    h = jnp.dot(x, w1_ref[0], preferred_element_type=jnp.float32) + b1_ref[0]
    h = jnp.maximum(h, 0.0).astype(x.dtype)                          # ReLU, (rows, TF)
    acc_ref[...] += jnp.dot(h, w2_ref[0], preferred_element_type=jnp.float32)

    @pl.when(f == pl.num_programs(3) - 1)
    def _():
        o_ref[...] = ((acc_ref[...] + b2_ref[0])
                      .reshape(bg, 1, tc, m).astype(o_ref.dtype))


# ------------------------------------------------------------------- tile selection
def _vmem_budget_and_limit():
    """(tile-sizing budget, compiler vmem_limit_bytes), TPU-generation aware."""
    phys = None
    try:
        phys = getattr(pltpu.get_tpu_info(), "vmem_capacity_bytes", None)
    except Exception:
        phys = None
    if phys is None:
        try:
            kind = jax.devices()[0].device_kind.lower()
        except Exception:
            kind = ""
        phys = (64 << 20) if ("v7" in kind or "7x" in kind) else (128 << 20)
    if phys >= (128 << 20):          # v5e / v6e: 128 MiB physical VMEM
        return 96 << 20, 110 << 20
    return 44 << 20, 56 << 20        # v7x: 64 MiB physical, leave compiler headroom


def _divisor_tiles(dim, align):
    """Divisors of `dim` that are multiples of `align` (plus `dim` itself), descending."""
    cands = {dim}
    t = align
    while t < dim:
        if dim % t == 0:
            cands.add(t)
        t += align
    return sorted(cands, reverse=True)


def _select_tiles(G, C, M, F, x_itemsize, w_itemsize, budget):
    """Pick (BG, TC, TF).

    BG in {1, G}: fold the group axis into the token tile so small-capacity cases
    still fill the MXU rows.  Prefer TF = F (weights stay resident in VMEM across an
    expert's whole (g, c) sweep); otherwise maximize rows (BG*TC) first, since
    arithmetic intensity on the weight stream scales with the token tile."""
    sub = max(8, 32 // x_itemsize)       # sublane packing: f32 -> 8, bf16 -> 16, i8 -> 32

    tc_cands = _divisor_tiles(C, sub)    # always contains C itself
    tf_cands = _divisor_tiles(F, 128)    # always contains F itself

    pairs = []                           # candidate (BG, TC), ranked by rows
    for tc in tc_cands:
        pairs.append((1, tc))
        # Folding needs the in-kernel (BG,1,TC,M)->(BG*TC,M) reshape to be a clean
        # sublane merge, i.e. TC must be a multiple of the sublane packing.
        if G > 1 and tc % sub == 0:
            pairs.append((G, tc))
    pairs.sort(key=lambda p: (p[0] * p[1], p[0]), reverse=True)

    def usage(bg, tc, tf, tiled_f):
        act = 2 * 2 * bg * tc * M * x_itemsize            # x + out, double-buffered
        wts = 2 * (2 * M * tf + tf + M) * w_itemsize      # w1+w2+b1+b2, double-buffered
        inter = bg * tc * tf * (4 + x_itemsize)           # f32 h + low-precision copy
        acc = bg * tc * M * 4 if tiled_f else 0           # f32 scratch accumulator
        return act + wts + inter + acc

    # Pass 1: resident weights (TF = F, nf == 1).
    for bg, tc in pairs:
        if usage(bg, tc, F, False) <= budget:
            return bg, tc, F
    # Pass 2: F must be tiled; maximize rows first, then the largest fitting TF.
    for bg, tc in pairs:
        for tf in tf_cands:
            if tf == F:
                continue
            if usage(bg, tc, tf, True) <= budget:
                return bg, tc, tf
    # Fallback: smallest tiles (compiler vmem limit still applies).
    return 1, tc_cands[-1], tf_cands[-1]


# ------------------------------------------------------------------------ host wrappers
def prepare_expert_params(w1, b1, w2, b2):
    """One-time layout conversion from PyTorch Linear (out_features, in_features)
    layout to the kernel layout (input-dim first).  Call once, outside the hot path."""
    E, F, M = w1.shape
    w1_t = jnp.transpose(w1, (0, 2, 1))   # (E, M, F)
    w2_t = jnp.transpose(w2, (0, 2, 1))   # (E, F, M)
    b1_r = b1.reshape(E, 1, F)
    b2_r = b2.reshape(E, 1, M)
    return w1_t, b1_r, w2_t, b2_r


def experts_forward(inputs, w1_t, b1_r, w2_t, b2_r, *, vmem_budget_bytes=None):
    """inputs: (G, E, C, M); w1_t: (E, M, F); b1_r: (E, 1, F); w2_t: (E, F, M);
    b2_r: (E, 1, M).  Returns (G, E, C, M) — identical semantics to
    torch chunk(dim=1) -> expert_i -> cat(dim=1)."""
    G, E, C, M = inputs.shape
    F = w1_t.shape[2]
    x_itemsize = inputs.dtype.itemsize
    w_itemsize = w1_t.dtype.itemsize

    budget, vmem_limit = _vmem_budget_and_limit()
    if vmem_budget_bytes is not None:     # test / tuning hook
        budget = vmem_budget_bytes

    BG, TC, TF = _select_tiles(G, C, M, F, x_itemsize, w_itemsize, budget)
    GG = G // BG
    nc = C // TC
    nf = F // TF

    # Honest HBM-traffic estimate: weights are re-read once per (g, c) step if nf>1.
    weight_reads_per_expert = 1 if nf == 1 else GG * nc
    flops = 4 * G * E * C * M * F                      # two matmuls, 2*MNK each
    bytes_accessed = (2 * G * E * C * M * x_itemsize
                      + weight_reads_per_expert * E * (2 * M * F + F + M) * w_itemsize)
    cost = pl.CostEstimate(flops=flops, transcendentals=0,
                           bytes_accessed=bytes_accessed)

    # Megacore split goes on the expert / group axes (so the two TensorCores don't
    # duplicate the same expert's weight DMA); token-tile and F axes are arbitrary.
    semantics = (("parallel", "parallel", "arbitrary") if nf == 1
                 else ("parallel", "parallel", "arbitrary", "arbitrary"))
    cparams = pltpu.CompilerParams(dimension_semantics=semantics,
                                   vmem_limit_bytes=vmem_limit)

    if nf == 1:
        grid = (E, GG, nc)
        in_specs = [
            # Expert-major access folded into the index_map on the original
            # (G, E, C, M) array — pure DMA addressing, no XLA transpose.
            pl.BlockSpec((BG, 1, TC, M), lambda e, g, c: (g, e, c, 0)),
            # Weight index_maps depend only on e: weights stay resident in VMEM
            # across the whole (g, c) sweep of an expert.
            pl.BlockSpec((1, M, F), lambda e, g, c: (e, 0, 0)),
            pl.BlockSpec((1, 1, F), lambda e, g, c: (e, 0, 0)),
            pl.BlockSpec((1, F, M), lambda e, g, c: (e, 0, 0)),
            pl.BlockSpec((1, 1, M), lambda e, g, c: (e, 0, 0)),
        ]
        out_specs = pl.BlockSpec((BG, 1, TC, M), lambda e, g, c: (g, e, c, 0))
        scratch = []
        kernel = expert_ffn_kernel_resident
    else:
        grid = (E, GG, nc, nf)
        in_specs = [
            pl.BlockSpec((BG, 1, TC, M), lambda e, g, c, f: (g, e, c, 0)),
            pl.BlockSpec((1, M, TF), lambda e, g, c, f: (e, 0, f)),
            pl.BlockSpec((1, 1, TF), lambda e, g, c, f: (e, 0, f)),
            pl.BlockSpec((1, TF, M), lambda e, g, c, f: (e, f, 0)),
            pl.BlockSpec((1, 1, M), lambda e, g, c, f: (e, 0, 0)),
        ]
        out_specs = pl.BlockSpec((BG, 1, TC, M), lambda e, g, c, f: (g, e, c, 0))
        scratch = [pltpu.VMEM((BG * TC, M), jnp.float32)]
        kernel = expert_ffn_kernel_tiled

    return pl.pallas_call(
        kernel,
        out_shape=jax.ShapeDtypeStruct((G, E, C, M), inputs.dtype),
        grid_spec=pltpu.PrefetchScalarGridSpec(
            num_scalar_prefetch=0,
            grid=grid,
            in_specs=in_specs,
            out_specs=out_specs,
            scratch_shapes=scratch,
        ),
        compiler_params=cparams,
        cost_estimate=cost,
    )(inputs, w1_t, b1_r, w2_t, b2_r)


def make_expert_params(num_local_experts, d_model, d_ff, dtype=jnp.float32):
    """Deterministic init matching the reference: every parameter of expert i == i + 1.
    Returned in PyTorch Linear layout: w (out_features, in_features), b (out_features,)."""
    E = num_local_experts
    scale = jnp.arange(1, E + 1, dtype=dtype)                        # (E,)
    w1 = jnp.ones((E, d_ff, d_model), dtype) * scale[:, None, None]
    b1 = jnp.ones((E, d_ff), dtype) * scale[:, None]
    w2 = jnp.ones((E, d_model, d_ff), dtype) * scale[:, None, None]
    b2 = jnp.ones((E, d_model), dtype) * scale[:, None]
    return w1, b1, w2, b2


def reference_forward(inputs, w1, b1, w2, b2):
    """Pure-JAX reference of the PyTorch chunk(dim=1) -> expert_i -> cat(dim=1)."""
    E = w1.shape[0]
    outs = []
    for e in range(E):
        chunk = inputs[:, e]                                         # (G, C, M)
        h = jnp.maximum(jnp.einsum("gcm,fm->gcf", chunk, w1[e]) + b1[e], 0.0)
        outs.append((jnp.einsum("gcf,mf->gcm", h, w2[e]) + b2[e])[:, None])
    return jnp.concatenate(outs, axis=1)                             # (G, E, C, M)


if __name__ == "__main__":
    # --- Test 1: small shapes, resident-weight path (nf == 1, G folded into rows).
    G, E, C, M, F = 2, 2, 8, 32, 64
    inputs = jax.random.normal(jax.random.PRNGKey(0), (G, E, C, M), dtype=jnp.float32)
    w1, b1, w2, b2 = make_expert_params(E, M, F)
    w1_t, b1_r, w2_t, b2_r = prepare_expert_params(w1, b1, w2, b2)   # one-time prep

    fwd = jax.jit(experts_forward)
    out = jax.block_until_ready(fwd(inputs, w1_t, b1_r, w2_t, b2_r))
    ref = reference_forward(inputs, w1, b1, w2, b2)
    assert out.shape == inputs.shape
    assert jnp.allclose(out, ref, rtol=1e-5, atol=1e-3), "mismatch (resident path)"

    # --- Test 2: force the F-tiled accumulator path with a tiny VMEM budget.
    G2, E2, C2, M2, F2 = 2, 2, 16, 128, 256
    inputs2 = jax.random.normal(jax.random.PRNGKey(0), (G2, E2, C2, M2), jnp.float32)
    p2 = make_expert_params(E2, M2, F2)
    t2 = prepare_expert_params(*p2)
    fwd2 = jax.jit(functools.partial(experts_forward, vmem_budget_bytes=400 * 1024))
    out2 = jax.block_until_ready(fwd2(inputs2, *t2))
    ref2 = reference_forward(inputs2, *p2)
    assert jnp.allclose(out2, ref2, rtol=1e-5, atol=1e-2), "mismatch (tiled path)"

    print("KERNEL_OK")
</pallas_src>

<mosaic_0001>
module attributes {stable_mosaic.version = 11 : i64} {
  func.func @expert_ffn_kernel_resident(%arg0: i32, %arg1: i32, %arg2: i32, %arg3: memref<2x1x8x32xf32, #tpu.memory_space<vmem>>, %arg4: memref<1x32x64xf32, #tpu.memory_space<vmem>>, %arg5: memref<1x1x64xf32, #tpu.memory_space<vmem>>, %arg6: memref<1x64x32xf32, #tpu.memory_space<vmem>>, %arg7: memref<1x1x32xf32, #tpu.memory_space<vmem>>, %arg8: memref<2x1x8x32xf32, #tpu.memory_space<vmem>>) attributes {dimension_semantics = [#tpu.dimension_semantics<parallel>, #tpu.dimension_semantics<parallel>, #tpu.dimension_semantics<arbitrary>], iteration_bounds = array<i64: 2, 1, 1>, scalar_prefetch = 0 : i64, scratch_operands = 0 : i64, tpu.core_type = #tpu.core_type<tc>, window_params = [{transform_indices = @transform_0, window_bounds = array<i64: 2, 1, 8, 32>}, {transform_indices = @transform_1, window_bounds = array<i64: 1, 32, 64>}, {transform_indices = @transform_2, window_bounds = array<i64: 1, 1, 64>}, {transform_indices = @transform_3, window_bounds = array<i64: 1, 64, 32>}, {transform_indices = @transform_4, window_bounds = array<i64: 1, 1, 32>}, {transform_indices = @transform_5, window_bounds = array<i64: 2, 1, 8, 32>}]} {
    %c0 = arith.constant 0 : index
    %c0_0 = arith.constant 0 : index
    %c0_1 = arith.constant 0 : index
    %c0_2 = arith.constant 0 : index
    %0 = vector.load %arg3[%c0, %c0_0, %c0_1, %c0_2] : memref<2x1x8x32xf32, #tpu.memory_space<vmem>>, vector<2x1x8x32xf32>
    %1 = vector.shape_cast %0 : vector<2x1x8x32xf32> to vector<16x32xf32>
    %c0_3 = arith.constant 0 : index
    %c0_4 = arith.constant 0 : index
    %c0_5 = arith.constant 0 : index
    %2 = vector.load %arg4[%c0_3, %c0_4, %c0_5] : memref<1x32x64xf32, #tpu.memory_space<vmem>>, vector<1x32x64xf32>
    %3 = vector.shape_cast %2 : vector<1x32x64xf32> to vector<32x64xf32>
    %cst = arith.constant dense<0.000000e+00> : vector<16x64xf32>
    %4 = tpu.matmul %1, %3, %cst {dimension_numbers = #tpu.dot_dimension_numbers<[1], [0], [0], [1], [0, 0, 1, 1], [], []>} : vector<16x32xf32>, vector<32x64xf32>, vector<16x64xf32> -> vector<16x64xf32>
    %c0_6 = arith.constant 0 : index
    %c0_7 = arith.constant 0 : index
    %c0_8 = arith.constant 0 : index
    %5 = vector.load %arg5[%c0_6, %c0_7, %c0_8] : memref<1x1x64xf32, #tpu.memory_space<vmem>>, vector<1x1x64xf32>
    %6 = vector.shape_cast %5 : vector<1x1x64xf32> to vector<1x64xf32>
    %7 = vector.broadcast %6 : vector<1x64xf32> to vector<16x64xf32>
    %8 = arith.addf %4, %7 : vector<16x64xf32>
    %cst_9 = arith.constant 0.000000e+00 : f32
    %9 = vector.broadcast %cst_9 : f32 to vector<16x64xf32>
    %10 = arith.maximumf %8, %9 : vector<16x64xf32>
    %c0_10 = arith.constant 0 : index
    %c0_11 = arith.constant 0 : index
    %c0_12 = arith.constant 0 : index
    %11 = vector.load %arg6[%c0_10, %c0_11, %c0_12] : memref<1x64x32xf32, #tpu.memory_space<vmem>>, vector<1x64x32xf32>
    %12 = vector.shape_cast %11 : vector<1x64x32xf32> to vector<64x32xf32>
    %cst_13 = arith.constant dense<0.000000e+00> : vector<16x32xf32>
    %13 = tpu.matmul %10, %12, %cst_13 {dimension_numbers = #tpu.dot_dimension_numbers<[1], [0], [0], [1], [0, 0, 1, 1], [], []>} : vector<16x64xf32>, vector<64x32xf32>, vector<16x32xf32> -> vector<16x32xf32>
    %c0_14 = arith.constant 0 : index
    %c0_15 = arith.constant 0 : index
    %c0_16 = arith.constant 0 : index
    %14 = vector.load %arg7[%c0_14, %c0_15, %c0_16] : memref<1x1x32xf32, #tpu.memory_space<vmem>>, vector<1x1x32xf32>
    %15 = vector.shape_cast %14 : vector<1x1x32xf32> to vector<1x32xf32>
    %16 = vector.broadcast %15 : vector<1x32xf32> to vector<16x32xf32>
    %17 = arith.addf %13, %16 : vector<16x32xf32>
    %18 = vector.shape_cast %17 : vector<16x32xf32> to vector<2x1x8x32xf32>
    %c0_17 = arith.constant 0 : index
    %c0_18 = arith.constant 0 : index
    %c0_19 = arith.constant 0 : index
    %c0_20 = arith.constant 0 : index
    %19 = vector.load %arg8[%c0_17, %c0_18, %c0_19, %c0_20] : memref<2x1x8x32xf32, #tpu.memory_space<vmem>>, vector<2x1x8x32xf32>
    tpu.vector_store %arg8[%c0_17, %c0_18, %c0_19, %c0_20], %18 {strides = array<i32>} : memref<2x1x8x32xf32, #tpu.memory_space<vmem>>, vector<2x1x8x32xf32>,
    return
  }
  func.func @transform_0(%arg0: i32, %arg1: i32, %arg2: i32) -> (i32, i32, i32, i32) {
    %c0_i32 = arith.constant 0 : i32
    %c0_i32_0 = arith.constant 0 : i32
    return %arg1, %arg0, %arg2, %c0_i32 : i32, i32, i32, i32
  }
  func.func @transform_1(%arg0: i32, %arg1: i32, %arg2: i32) -> (i32, i32, i32) {
    %c0_i32 = arith.constant 0 : i32
    %c0_i32_0 = arith.constant 0 : i32
    %c0_i32_1 = arith.constant 0 : i32
    return %arg0, %c0_i32, %c0_i32_0 : i32, i32, i32
  }
  func.func @transform_2(%arg0: i32, %arg1: i32, %arg2: i32) -> (i32, i32, i32) {
    %c0_i32 = arith.constant 0 : i32
    %c0_i32_0 = arith.constant 0 : i32
    %c0_i32_1 = arith.constant 0 : i32
    return %arg0, %c0_i32, %c0_i32_0 : i32, i32, i32
  }
  func.func @transform_3(%arg0: i32, %arg1: i32, %arg2: i32) -> (i32, i32, i32) {
    %c0_i32 = arith.constant 0 : i32
    %c0_i32_0 = arith.constant 0 : i32
    %c0_i32_1 = arith.constant 0 : i32
    return %arg0, %c0_i32, %c0_i32_0 : i32, i32, i32
  }
  func.func @transform_4(%arg0: i32, %arg1: i32, %arg2: i32) -> (i32, i32, i32) {
    %c0_i32 = arith.constant 0 : i32
    %c0_i32_0 = arith.constant 0 : i32
    %c0_i32_1 = arith.constant 0 : i32
    return %arg0, %c0_i32, %c0_i32_0 : i32, i32, i32
  }
  func.func @transform_5(%arg0: i32, %arg1: i32, %arg2: i32) -> (i32, i32, i32, i32) {
    %c0_i32 = arith.constant 0 : i32
    %c0_i32_0 = arith.constant 0 : i32
    return %arg1, %arg0, %arg2, %c0_i32 : i32, i32, i32, i32
  }
}

</mosaic_0001>

<llo_original>
// kernel: experts_forward.1
$region0: #{experts_forward.1}
  #allocation0 [shape = 'u32[]', space=smem, size = 0x4, offset = 0x4, fixed_abs, tag = 'smem constant byte address 0x4 - core index']
  #allocation1 [shape = 'u32[72,128]{1,0:T(1,128)}', space=vmem, size = 0x9000, scoped, tag = 'internal scratch']
  %s0 = inlined_call_operand.vmem [shape: f32[2,2,8,32], index: 0, kind: input, shape index: {}]
  %s1 = inlined_call_operand.vmem [shape: f32[2,32,64], index: 1, kind: input, shape index: {}]
  %s2 = inlined_call_operand.vmem [shape: f32[2,1,64], index: 2, kind: input, shape index: {}]
  %s3 = inlined_call_operand.vmem [shape: f32[2,64,32], index: 3, kind: input, shape index: {}]
  %s4 = inlined_call_operand.vmem [shape: f32[2,1,32], index: 4, kind: input, shape index: {}]
  %s5 = inlined_call_operand.hbm [shape: f32[2,2,8,32], index: 5, kind: output, shape index: {}]
  %s6 = sld [smem:[#allocation0]]
  $region91: #{experts_forward.1} parent=0
    _
  %s8 = ssub.s32 1, %s6
  %s9 = scalar_select 0, %s8, %s6
  $region1: #{experts_forward.1} parent=0
    #allocation2 [shape = 'u8[16384]{0}', space=vmem, size = 0x4000, scoped, tag = 'input window, operand 0']
    #allocation3 [shape = 'u8[16384]{0}', space=vmem, size = 0x4000, scoped, tag = 'output window, operand 0']
    #allocation4 [shape = 's32[2]{0}', space=sflag, size = 0x8, scoped, tag = 'scoped memory for experts_forward.1']
    %10 = vsyncpa [#allocation4], 0
    %s11 = scalar_lea.sflag [#allocation4], 1
    %12 = vsyncpa %s11, 0
    loop: start=0, step=1, limit=4
    $region2: #{experts_forward.1} parent=1 // loop_pre_header
      _
    $region3: #{experts_forward.1} parent=1 // loop_header
      %s14 = sphi 0, %s18
      %p15 = scmp.ge.s32.totalorder %s14, 4
      %s21 = sphi 0, %s40
      %s22 = sphi 0, %s36
      %s23 = sphi 0, %s32
      %s24 = sphi 0, %s21
      %s25 = sphi 0, %s22
      %s26 = sphi 0, %s23
      %s27 = sphi 0, %s24
      %s28 = sphi 0, %s25
      %s29 = sphi 0, %s26
      %s47 = sphi 0, %s49
      %s50 = sphi 0, %s47
      %s51 = sphi 0, %s50
      %s67 = sphi 0, %s51
      %s73 = sphi 0, %s75
      %s76 = sphi 0, %s73
      %s77 = sphi 0, %s76
      %s93 = sphi 0, %s77
      %s99 = sphi 0, %s101
      %s102 = sphi 0, %s99
      %s103 = sphi 0, %s102
      %s119 = sphi 0, %s103
      %s125 = sphi 0, %s127
      %s128 = sphi 0, %s125
      %s129 = sphi 0, %s128
      %s145 = sphi 0, %s129
      %s151 = sphi 0, %s153
      %s154 = sphi 0, %s151
      %s155 = sphi 0, %s154
      %s171 = sphi 0, %s155
      %s181 = sphi 0, %s183
      %s184 = sphi 0, %s181
      %s185 = sphi 0, %s184
      %s201 = sphi 0, %s185
    $region4: #{experts_forward.1} parent=1 // loop_header_branch
      %17 = sbr.rel (%p15) target = $region8
    $region5: #{experts_forward.1} parent=1 // loop_body
      %s19 = ssub.s32 %s14, 1
      %s20 = ssub.s32 %s14, 2
      %s30 = sadd.s32 1, %s23
      %p31 = scmp.ge.s32.totalorder %s30, 1
      %s32 = scalar_select %p31, 0, %s30
      %s33 = sadd.s32 1, %s22
      %s34 = scalar_select %p31, %s33, %s22
      %p35 = scmp.ge.s32.totalorder %s34, 1
      %s36 = scalar_select %p35, 0, %s34
      %s37 = sadd.s32 1, %s21
      %s38 = scalar_select %p35, %s37, %s21
      %p39 = scmp.ge.s32.totalorder %s38, 2
      %s40 = scalar_select %p39, 0, %s38
      %s41 = ssub.s32 %s22, %s36
      %s42 = ssub.s32 %s21, %s40
      %s43 = sor.u32 %s41, %s42
      %s44 = ssub.s32 %s23, %s32
      %s45 = sor.u32 %s43, %s44
      %p46 = scmp.eq.s32.totalorder %s45, 0
      %s48 = sadd.s32 %s47, 1
      %s49 = scalar_select %p46, %s47, %s48
      %p52 = pneg %p46
      %p53 = scmp.eq.s32.totalorder %s14, 1
      %p54 = por %p52, %p53
      %p55 = scmp.ne.s32.totalorder %s47, %s50
      %p56 = scmp.eq.s32.totalorder %s14, 0
      %p57 = por %p55, %p56
      %p58 = scmp.ne.s32.totalorder %s47, %s50
      %p59 = scmp.eq.s32.totalorder %s19, 1
      %p60 = por %p58, %p59
      %p61 = scmp.ne.s32.totalorder %s50, %s51
      %p62 = scmp.eq.s32.totalorder %s19, 0
      %p63 = por %p61, %p62
      %p64 = scmp.ne.s32.totalorder %s50, %s51
      %p65 = scmp.eq.s32.totalorder %s20, 1
      %p66 = por %p64, %p65
      %p68 = scmp.ne.s32.totalorder %s51, %s67
      %p69 = scmp.eq.s32.totalorder %s20, 0
      %p70 = por %p68, %p69
      %s71 = ssub.s32 %s21, %s40
      %p72 = scmp.eq.s32.totalorder %s71, 0
      %s74 = sadd.s32 %s73, 1
      %s75 = scalar_select %p72, %s73, %s74
      %p78 = pneg %p72
      %p79 = scmp.eq.s32.totalorder %s14, 1
      %p80 = por %p78, %p79
      %p81 = scmp.ne.s32.totalorder %s73, %s76
      %p82 = scmp.eq.s32.totalorder %s14, 0
      %p83 = por %p81, %p82
      %p84 = scmp.ne.s32.totalorder %s73, %s76
      %p85 = scmp.eq.s32.totalorder %s19, 1
      %p86 = por %p84, %p85
      %p87 = scmp.ne.s32.totalorder %s76, %s77
      %p88 = scmp.eq.s32.totalorder %s19, 0
      %p89 = por %p87, %p88
      %p90 = scmp.ne.s32.totalorder %s76, %s77
      %p91 = scmp.eq.s32.totalorder %s20, 1
      %p92 = por %p90, %p91
      %p94 = scmp.ne.s32.totalorder %s77, %s93
      %p95 = scmp.eq.s32.totalorder %s20, 0
      %p96 = por %p94, %p95
      %s97 = ssub.s32 %s21, %s40
      %p98 = scmp.eq.s32.totalorder %s97, 0
      %s100 = sadd.s32 %s99, 1
      %s101 = scalar_select %p98, %s99, %s100
      %p104 = pneg %p98
      %p105 = scmp.eq.s32.totalorder %s14, 1
      %p106 = por %p104, %p105
      %p107 = scmp.ne.s32.totalorder %s99, %s102
      %p108 = scmp.eq.s32.totalorder %s14, 0
      %p109 = por %p107, %p108
      %p110 = scmp.ne.s32.totalorder %s99, %s102
      %p111 = scmp.eq.s32.totalorder %s19, 1
      %p112 = por %p110, %p111
      %p113 = scmp.ne.s32.totalorder %s102, %s103
      %p114 = scmp.eq.s32.totalorder %s19, 0
      %p115 = por %p113, %p114
      %p116 = scmp.ne.s32.totalorder %s102, %s103
      %p117 = scmp.eq.s32.totalorder %s20, 1
      %p118 = por %p116, %p117
      %p120 = scmp.ne.s32.totalorder %s103, %s119
      %p121 = scmp.eq.s32.totalorder %s20, 0
      %p122 = por %p120, %p121
      %s123 = ssub.s32 %s21, %s40
      %p124 = scmp.eq.s32.totalorder %s123, 0
      %s126 = sadd.s32 %s125, 1
      %s127 = scalar_select %p124, %s125, %s126
      %p130 = pneg %p124
      %p131 = scmp.eq.s32.totalorder %s14, 1
      %p132 = por %p130, %p131
      %p133 = scmp.ne.s32.totalorder %s125, %s128
      %p134 = scmp.eq.s32.totalorder %s14, 0
      %p135 = por %p133, %p134
      %p136 = scmp.ne.s32.totalorder %s125, %s128
      %p137 = scmp.eq.s32.totalorder %s19, 1
      %p138 = por %p136, %p137
      %p139 = scmp.ne.s32.totalorder %s128, %s129
      %p140 = scmp.eq.s32.totalorder %s19, 0
      %p141 = por %p139, %p140
      %p142 = scmp.ne.s32.totalorder %s128, %s129
      %p143 = scmp.eq.s32.totalorder %s20, 1
      %p144 = por %p142, %p143
      %p146 = scmp.ne.s32.totalorder %s129, %s145
      %p147 = scmp.eq.s32.totalorder %s20, 0
      %p148 = por %p146, %p147
      %s149 = ssub.s32 %s21, %s40
      %p150 = scmp.eq.s32.totalorder %s149, 0
      %s152 = sadd.s32 %s151, 1
      %s153 = scalar_select %p150, %s151, %s152
      %p156 = pneg %p150
      %p157 = scmp.eq.s32.totalorder %s14, 1
      %p158 = por %p156, %p157
      %p159 = scmp.ne.s32.totalorder %s151, %s154
      %p160 = scmp.eq.s32.totalorder %s14, 0
      %p161 = por %p159, %p160
      %p162 = scmp.ne.s32.totalorder %s151, %s154
      %p163 = scmp.eq.s32.totalorder %s19, 1
      %p164 = por %p162, %p163
      %p165 = scmp.ne.s32.totalorder %s154, %s155
      %p166 = scmp.eq.s32.totalorder %s19, 0
      %p167 = por %p165, %p166
      %p168 = scmp.ne.s32.totalorder %s154, %s155
      %p169 = scmp.eq.s32.totalorder %s20, 1
      %p170 = por %p168, %p169
      %p172 = scmp.ne.s32.totalorder %s155, %s171
      %p173 = scmp.eq.s32.totalorder %s20, 0
      %p174 = por %p172, %p173
      %s175 = ssub.s32 %s22, %s36
      %s176 = ssub.s32 %s21, %s40
      %s177 = sor.u32 %s175, %s176
      %s178 = ssub.s32 %s23, %s32
      %s179 = sor.u32 %s177, %s178
      %p180 = scmp.eq.s32.totalorder %s179, 0
      %s182 = sadd.s32 %s181, 1
      %s183 = scalar_select %p180, %s181, %s182
      %p186 = pneg %p180
      %p187 = scmp.eq.s32.totalorder %s14, 1
      %p188 = por %p186, %p187
      %p189 = scmp.ne.s32.totalorder %s181, %s184
      %p190 = scmp.eq.s32.totalorder %s14, 0
      %p191 = por %p189, %p190
      %p192 = scmp.ne.s32.totalorder %s181, %s184
      %p193 = scmp.eq.s32.totalorder %s19, 1
      %p194 = por %p192, %p193
      %p195 = scmp.ne.s32.totalorder %s184, %s185
      %p196 = scmp.eq.s32.totalorder %s19, 0
      %p197 = por %p195, %p196
      %p198 = scmp.ne.s32.totalorder %s184, %s185
      %p199 = scmp.eq.s32.totalorder %s20, 1
      %p200 = por %p198, %p199
      %p202 = scmp.ne.s32.totalorder %s185, %s201
      %p203 = scmp.eq.s32.totalorder %s20, 0
      %p204 = por %p202, %p203
      %p205 = scmp.le.s32.totalorder 1, %s14
      %p206 = scmp.lt.s32.totalorder %s14, 3
      %p207 = pnand %p205, %p206
      %p208 = pneg %p207
      // Predicated region
      $region9: #{experts_forward.1} parent=5 // pred_check
        _
      $region10: #{experts_forward.1} parent=5 // pred_check_branch
        %210 = sbr.rel (%p207) target = $region12
      $region11: #{experts_forward.1} parent=5 // pred_region
        %s211 = ssub.s32 %s14, 1
      $region12: #{experts_forward.1} parent=5 // pred_fallthru
        _
      %p212 = scmp.lt.s32.totalorder %s14, 2
      // Predicated region
      $region13: #{experts_forward.1} parent=5 // pred_check
        %p213 = pneg %p212
      $region14: #{experts_forward.1} parent=5 // pred_check_branch
        %215 = sbr.rel (%p213) target = $region16
      $region15: #{experts_forward.1} parent=5 // pred_region
        // Predicated region
        $region17: #{experts_forward.1} parent=15 // pred_check
          %p216 = pneg %p57
        $region18: #{experts_forward.1} parent=15 // pred_check_branch
          %218 = sbr.rel (%p216) target = $region20
        $region19: #{experts_forward.1} parent=15 // pred_region
          %s219 = sand.u32 %s47, 1
          %s220 = sand.u32 %s47, 1
          %s221 = smul.addr %s220, 16
          %s222 = scalar_lea.vmem [#allocation2], %s221
          %s223 = smul.u32 2, %s22
          %s224 = sadd.s32 %s23, %s21
          %s225 = smul.addr %s223, 2
          %s226 = sadd.s32 %s224, %s225
          %s227 = smul.addr %s226, 8
          %s228 = scalar_lea.vmem %s0, %s227
          // Predicated region
          $region21: #{experts_forward.1} parent=19 // pred_check
            _
          $region22: #{experts_forward.1} parent=19 // pred_check_branch
            %230 = sbr.rel (0) target = $region24
          $region23: #{experts_forward.1} parent=19 // pred_region
            // Predicated region
            $region25: #{experts_forward.1} parent=23 // pred_check
              _
            $region26: #{experts_forward.1} parent=23 // pred_check_branch
              %232 = sbr.rel (0) target = $region28
            $region27: #{experts_forward.1} parent=23 // pred_region
              // Predicated region
              $region40: #{experts_forward.1} parent=27 // pred_check
                _
              $region41: #{experts_forward.1} parent=27 // pred_check_branch
                %250 = sbr.rel (0) target = $region43
              $region42: #{experts_forward.1} parent=27 // pred_region
                loop: start=0, step=1, limit=1
                $region44: #{experts_forward.1} parent=42 // loop_pre_header
                  _
                $region45: #{experts_forward.1} parent=42 // loop_header
                  %s252 = sphi 0, %s256
                  %p253 = scmp.ge.s32.totalorder %s252, 1
                  %s257 = sphi %s228, %s228
                  %s258 = sphi %s222, %s222
                $region46: #{experts_forward.1} parent=42 // loop_header_branch
                  %255 = sbr.rel (%p253) target = $region50
                $region47: #{experts_forward.1} parent=42 // loop_body
                  %v259 = vld [vmem:[%s257] sm:$0xff]
                  %260 = vst [vmem:[%s258] sm:$0xff] %v259
                  %v261 = vld [vmem:[%s257 + $0x10] sm:$0xff]
                  %262 = vst [vmem:[%s258 + $0x8] sm:$0xff] %v261
                $region48: #{experts_forward.1} parent=42 // loop_footer
                  %s256 = sadd.s32 1, %s252
                $region49: #{experts_forward.1} parent=42 // loop_footer_branch
                  %251 = sbr.rel target = $region45
                $region50: #{experts_forward.1} parent=42 // loop_exit
                  _
              $region43: #{experts_forward.1} parent=27 // pred_fallthru
                _
              // Predicated region
              $region51: #{experts_forward.1} parent=27 // pred_check
                _
              $region52: #{experts_forward.1} parent=27 // pred_check_branch
                %264 = sbr.rel target = $region54
              $region53: #{experts_forward.1} parent=27 // pred_region
                _
              $region54: #{experts_forward.1} parent=27 // pred_fallthru
                _
            $region28: #{experts_forward.1} parent=23 // pred_fallthru
              _
            // Predicated region
            $region29: #{experts_forward.1} parent=23 // pred_check
              _
            $region30: #{experts_forward.1} parent=23 // pred_check_branch
              %234 = sbr.rel target = $region32
            $region31: #{experts_forward.1} parent=23 // pred_region
              %s236 = ssub.s32 256, 1
              loop: start=0, step=1, limit=1
              $region33: #{experts_forward.1} parent=31 // loop_pre_header
                _
              $region34: #{experts_forward.1} parent=31 // loop_header
                %s238 = sphi 0, %s242
                %p239 = scmp.ge.s32.totalorder %s238, 1
                %s243 = sphi %s228, %s228
                %s244 = sphi %s222, %s222
              $region35: #{experts_forward.1} parent=31 // loop_header_branch
                %241 = sbr.rel (%p239) target = $region39
              $region36: #{experts_forward.1} parent=31 // loop_body
                %v245 = vld [vmem:[%s243] sm:%s236]
                %246 = vst [vmem:[%s244] sm:%s236] %v245
                %v247 = vld [vmem:[%s243 + $0x10] sm:%s236]
                %248 = vst [vmem:[%s244 + $0x8] sm:%s236] %v247
              $region37: #{experts_forward.1} parent=31 // loop_footer
                %s242 = sadd.s32 1, %s238
              $region38: #{experts_forward.1} parent=31 // loop_footer_branch
                %237 = sbr.rel target = $region34
              $region39: #{experts_forward.1} parent=31 // loop_exit
                _
            $region32: #{experts_forward.1} parent=23 // pred_fallthru
              _
          $region24: #{experts_forward.1} parent=19 // pred_fallthru
            _
          %265 = vnop
        $region20: #{experts_forward.1} parent=15 // pred_fallthru
          _
        // Predicated region
        $region55: #{experts_forward.1} parent=15 // pred_check
          %p266 = pneg %p83
        $region56: #{experts_forward.1} parent=15 // pred_check_branch
          %268 = sbr.rel (%p266) target = $region58
        $region57: #{experts_forward.1} parent=15 // pred_region
          %p269 = scmp.lt.s32.totalorder %s21, 1
          %s270 = scalar_select %p269, %s21, 1
          %s271 = smul.addr %s270, 4
          %s272 = smul.addr %s271, 8
          %s273 = scalar_lea.vmem %s1, %s272
        $region58: #{experts_forward.1} parent=15 // pred_fallthru
          _
        // Predicated region
        $region59: #{experts_forward.1} parent=15 // pred_check
          %p274 = pneg %p109
        $region60: #{experts_forward.1} parent=15 // pred_check_branch
          %276 = sbr.rel (%p274) target = $region62
        $region61: #{experts_forward.1} parent=15 // pred_region
          %p277 = scmp.lt.s32.totalorder %s21, 1
          %s278 = scalar_select %p277, %s21, 1
          %s279 = scalar_lea.vmem %s2, %s278
        $region62: #{experts_forward.1} parent=15 // pred_fallthru
          _
        // Predicated region
        $region63: #{experts_forward.1} parent=15 // pred_check
          %p280 = pneg %p135
        $region64: #{experts_forward.1} parent=15 // pred_check_branch
          %282 = sbr.rel (%p280) target = $region66
        $region65: #{experts_forward.1} parent=15 // pred_region
          %p283 = scmp.lt.s32.totalorder %s21, 1
          %s284 = scalar_select %p283, %s21, 1
          %s285 = smul.addr %s284, 8
          %s286 = smul.addr %s285, 8
          %s287 = scalar_lea.vmem %s3, %s286
        $region66: #{experts_forward.1} parent=15 // pred_fallthru
          _
        // Predicated region
        $region67: #{experts_forward.1} parent=15 // pred_check
          %p288 = pneg %p161
        $region68: #{experts_forward.1} parent=15 // pred_check_branch
          %290 = sbr.rel (%p288) target = $region70
        $region69: #{experts_forward.1} parent=15 // pred_region
          %p291 = scmp.lt.s32.totalorder %s21, 1
          %s292 = scalar_select %p291, %s21, 1
          %s293 = scalar_lea.vmem %s4, %s292
        $region70: #{experts_forward.1} parent=15 // pred_fallthru
          _
      $region16: #{experts_forward.1} parent=5 // pred_fallthru
        _
      %p294 = scmp.le.s32.totalorder 1, %s14
      %p295 = scmp.lt.s32.totalorder %s14, 3
      %p296 = pnand %p294, %p295
      %p297 = pneg %p296
      // Predicated region
      $region71: #{experts_forward.1} parent=5 // pred_check
        _
      $region72: #{experts_forward.1} parent=5 // pred_check_branch
        %299 = sbr.rel (%p296) target = $region74
      $region73: #{experts_forward.1} parent=5 // pred_region
        %s300 = ssub.s32 %s14, 1
        %s301 = sand.u32 %s50, 1
        %s302 = sand.u32 %s50, 1
        %s303 = smul.addr %s302, 16
        %s304 = scalar_lea.vmem [#allocation2], %s303
        // Predicated region
        $region75: #{experts_forward.1} parent=73 // pred_check
          %p305 = pneg %p63
        $region76: #{experts_forward.1} parent=73 // pred_check_branch
          %307 = sbr.rel (%p305) target = $region78
        $region77: #{experts_forward.1} parent=73 // pred_region
          _
        $region78: #{experts_forward.1} parent=73 // pred_fallthru
          _
        %s308 = sand.u32 %s50, 1
        %s309 = sand.u32 %s50, 1
        %s310 = smul.addr %s309, 16
        %s311 = scalar_lea.vmem [#allocation2], %s310
        %p312 = pneg %p63
        %p313 = pneg %p60
        %p314 = scmp.lt.s32.totalorder %s24, 1
        %s315 = scalar_select %p314, %s24, 1
        %s316 = smul.addr %s315, 4
        %s317 = smul.addr %s316, 8
        %s318 = scalar_lea.vmem %s1, %s317
        %p319 = pneg %p89
        %p320 = pneg %p86
        %p321 = scmp.lt.s32.totalorder %s24, 1
        %s322 = scalar_select %p321, %s24, 1
        %s323 = scalar_lea.vmem %s2, %s322
        %p324 = pneg %p115
        %p325 = pneg %p112
        %p326 = scmp.lt.s32.totalorder %s24, 1
        %s327 = scalar_select %p326, %s24, 1
        %s328 = smul.addr %s327, 8
        %s329 = smul.addr %s328, 8
        %s330 = scalar_lea.vmem %s3, %s329
        %p331 = pneg %p141
        %p332 = pneg %p138
        %p333 = scmp.lt.s32.totalorder %s24, 1
        %s334 = scalar_select %p333, %s24, 1
        %s335 = scalar_lea.vmem %s4, %s334
        %p336 = pneg %p167
        %p337 = pneg %p164
        %p338 = pneg %p197
        %p339 = pneg %p194
        %s340 = sand.u32 %s184, 1
        %s341 = scalar_lea.sflag [#allocation4], %s340
        %s342 = sand.u32 %s184, 1
        %s343 = smul.addr %s342, 16
        %s344 = scalar_lea.vmem [#allocation3], %s343
        %s345 = smul.u32 2, %s25
        %p346 = scmp.lt.s32.totalorder %s24, 1
        %s347 = scalar_select %p346, %s24, 1
        %s348 = smul.addr %s347, 4
        %s349 = smul.addr %s348, 8
        %s350 = scalar_lea.vmem %s1, %s349
        %p351 = scmp.lt.s32.totalorder %s24, 1
        %s352 = scalar_select %p351, %s24, 1
        %s353 = scalar_lea.vmem %s2, %s352
        %p354 = scmp.lt.s32.totalorder %s24, 1
        %s355 = scalar_select %p354, %s24, 1
        %s356 = smul.addr %s355, 8
        %s357 = smul.addr %s356, 8
        %s358 = scalar_lea.vmem %s3, %s357
        %p359 = scmp.lt.s32.totalorder %s24, 1
        %s360 = scalar_select %p359, %s24, 1
        %s361 = scalar_lea.vmem %s4, %s360
        %s362 = smul.u32 2, %s25
        %v363 = vld [vmem:[%s304] sm:$0xff]
        %v364 = vld [vmem:[%s304 + $0x8] sm:$0xff]
        %v365 = vld [vmem:[%s350] sm:$0xff]
        %v366 = vld [vmem:[%s350 + $0x8] sm:$0xff]
        %v367 = vld [vmem:[%s350 + $0x10] sm:$0xff]
        %v368 = vld [vmem:[%s350 + $0x18] sm:$0xff]
        %v369 = vld [vmem:[%s353] sm:$0x1]
        %v371 = vperm.slane %v369, 0
        %vm373 = vcmask 261120
        %v375 = vsel %vm373, %v363, 0
        %v378 = vsel %vm373, %v364, 0
        %380 = vmatpush.msra.mxu0 0.0
        %381 = vmatpush.msra.mxu0 0.0
        %382 = vmatpush.msra.mxu0 0.0
        %383 = vmatpush.msra.mxu0 0.0
        %384 = vmatpush.msra.mxu0 0.0
        %385 = vmatpush.msra.mxu0 0.0
        %386 = vmatpush.msra.mxu0 0.0
        %387 = vmatpush.msra.mxu0 0.0
        %388 = vmatpush.msra.mxu0 0.0
        %389 = vmatpush.msra.mxu0 0.0
        %390 = vmatpush.msra.mxu0 0.0
        %391 = vmatpush.msra.mxu0 0.0
        %392 = vmatpush.msra.mxu0 %v368
        %393 = vmatpush.msra.mxu0 %v367
        %394 = vmatpush.msra.mxu0 %v366
        %395 = vmatpush.msra.mxu0 %v365
        %396 = vmatmul.f32.gmra.mxu0 %v375
        %v397 = vpop.f32.mrf.mxu0
        %v398 = vadd.f32 %v371, %v397
        %399 = vmatmul.f32.gmra.mxu0 %v378
        %v400 = vpop.f32.mrf.mxu0
        %v401 = vadd.f32 %v371, %v400
        %402 = vdwg.mxu0
        %v403 = vmax.f32 %v398, 0.0
        %v404 = vmax.f32 %v401, 0.0
        %v405 = vld [vmem:[%s358] sm:$0xff]
        %v406 = vld [vmem:[%s358 + $0x8] sm:$0xff]
        %v407 = vld [vmem:[%s358 + $0x10] sm:$0xff]
        %v408 = vld [vmem:[%s358 + $0x18] sm:$0xff]
        %v409 = vld [vmem:[%s358 + $0x20] sm:$0xff]
        %v410 = vld [vmem:[%s358 + $0x28] sm:$0xff]
        %v411 = vld [vmem:[%s358 + $0x30] sm:$0xff]
        %v412 = vld [vmem:[%s358 + $0x38] sm:$0xff]
        %v413 = vld [vmem:[%s361] sm:$0x1]
        %v415 = vperm.slane %v413, 0
        %vm417 = vcmask 523264
        %v419 = vsel %vm417, %v403, 0
        %v422 = vsel %vm417, %v404, 0
        %424 = vmatpush.msra.mxu0 0.0
        %425 = vmatpush.msra.mxu0 0.0
        %426 = vmatpush.msra.mxu0 0.0
        %427 = vmatpush.msra.mxu0 0.0
        %428 = vmatpush.msra.mxu0 0.0
        %429 = vmatpush.msra.mxu0 0.0
        %430 = vmatpush.msra.mxu0 0.0
        %431 = vmatpush.msra.mxu0 0.0
        %432 = vmatpush.msra.mxu0 %v412
        %433 = vmatpush.msra.mxu0 %v411
        %434 = vmatpush.msra.mxu0 %v410
        %435 = vmatpush.msra.mxu0 %v409
        %436 = vmatpush.msra.mxu0 %v408
        %437 = vmatpush.msra.mxu0 %v407
        %438 = vmatpush.msra.mxu0 %v406
        %439 = vmatpush.msra.mxu0 %v405
        %440 = vmatmul.f32.gmra.mxu0 %v419
        %v441 = vpop.f32.mrf.mxu0
        %v442 = vadd.f32 %v415, %v441
        %443 = vmatmul.f32.gmra.mxu0 %v422
        %v444 = vpop.f32.mrf.mxu0
        %v445 = vadd.f32 %v415, %v444
        %446 = vdwg.mxu0
        %447 = vst.msk [vmem:[%s344] sm:$0xff] %vm373, %v442
        %448 = vst.msk [vmem:[%s344 + $0x8] sm:$0xff] %vm373, %v445
        %s449 = sand.u32 %s184, 1
        %s450 = scalar_lea.sflag [#allocation4], %s449
        %s451 = sand.u32 %s184, 1
        %s452 = smul.addr %s451, 16
        %s453 = scalar_lea.vmem [#allocation3], %s452
        // Predicated region
        $region79: #{experts_forward.1} parent=73 // pred_check
          %p454 = pneg %p194
        $region80: #{experts_forward.1} parent=73 // pred_check_branch
          %456 = sbr.rel (%p454) target = $region82
        $region81: #{experts_forward.1} parent=73 // pred_region
          %s457 = smul.u32 2, %s25
          %459 = vsyncadd %s450, 0
          %s460 = sadd.s32 %s26, %s24
          %s461 = smul.addr %s457, 2
          %s462 = sadd.s32 %s460, %s461
          %s463 = smul.addr %s462, 8
          %s464 = scalar_lea.hbm %s5, %s463
          %s465 = sshll.u32 %s453, 4
          %s466 = int_to_ptr.vmem [resolvable:$true] %s465
          %s467 = sshll.u32 %s464, 4
          %s468 = int_to_ptr.hbm [resolvable:$true] %s467
          %473 = dma.vmem_to_hbm [thread:$0]  %s466, 256, %s468, %s450, 128, 256, 8
        $region82: #{experts_forward.1} parent=73 // pred_fallthru
          _
      $region74: #{experts_forward.1} parent=5 // pred_fallthru
        _
      %p474 = scmp.le.s32.totalorder 2, %s14
      // Predicated region
      $region83: #{experts_forward.1} parent=5 // pred_check
        %p475 = pneg %p474
      $region84: #{experts_forward.1} parent=5 // pred_check_branch
        %477 = sbr.rel (%p475) target = $region86
      $region85: #{experts_forward.1} parent=5 // pred_region
        %s478 = ssub.s32 %s14, 2
        // Predicated region
        $region87: #{experts_forward.1} parent=85 // pred_check
          %p479 = pneg %p200
        $region88: #{experts_forward.1} parent=85 // pred_check_branch
          %481 = sbr.rel (%p479) target = $region90
        $region89: #{experts_forward.1} parent=85 // pred_region
          %s482 = sand.u32 %s185, 1
          %s483 = scalar_lea.sflag [#allocation4], %s482
          %s484 = sand.u32 %s185, 1
          %s485 = smul.addr %s484, 16
          %s486 = scalar_lea.vmem [#allocation3], %s485
          %488 = dma.done %s483, 256
        $region90: #{experts_forward.1} parent=85 // pred_fallthru
          _
      $region86: #{experts_forward.1} parent=5 // pred_fallthru
        _
    $region6: #{experts_forward.1} parent=1 // loop_footer
      %s18 = sadd.s32 1, %s14
    $region7: #{experts_forward.1} parent=1 // loop_footer_branch
      %13 = sbr.rel target = $region3
    $region8: #{experts_forward.1} parent=1 // loop_exit
      _
    %489 = vsyncpa [#allocation4], 1
    %s490 = scalar_lea.sflag [#allocation4], 1
    %491 = vsyncpa %s490, 1

</llo_original>
